<compile_context>
chip_gen: v5e
topology: v5e:2x2
jax: 0.10.0
libtpu: 0.0.40
codegen_flags: <defaults>
</compile_context>

<pallas_src>
import functools
import math

import jax
import jax.numpy as jnp
from jax.experimental import pallas as pl
from jax.experimental.pallas import tpu as pltpu

EPS = 1e-6
NEG_SLOPE = 0.01  # nn.LeakyReLU() default negative_slope

# VMEM data budget for the fat normalization pass (x/out double buffers plus
# in-kernel f32 temporaries).  12 MiB is safe on every generation:
#   v5e : 16 MiB scoped default / 128 MiB physical (limit raised to 32 MiB)
#   v6e : 32 MiB scoped default / 128 MiB physical
#   v7x : 32 MiB scoped default /  64 MiB physical (keep well under ~32 MiB)
VMEM_DATA_BUDGET = 12 << 20
VMEM_LIMIT_BYTES = 32 << 20


def _leaky_relu(v):
    return jnp.where(v >= 0, v, NEG_SLOPE * v)


def _round_up(v, m):
    return ((v + m - 1) // m) * m


def _sublane_align(itemsize):
    # Rows per packed sublane tile: f32 -> 8, bf16 -> 16, int8/fp8 -> 32.
    return 8 * max(1, 4 // itemsize)


# ---------------------------------------------------------------------------
# Stage 1: per-batch style affine.  y block is (Cin, HWy) (natural layout) so
# the spatial pool is a lane reduction; the merged Equal_Linear matvec is a
# lane-broadcast multiply + sublane reduction (VPU/XLU only, no MXU needed).
# ---------------------------------------------------------------------------
def affine_kernel(y_ref, wt_ref, b_ref, out_ref, *, scale, inv_hwy):
    ypool = jnp.sum(y_ref[...].astype(jnp.float32), axis=1,
                    keepdims=True) * inv_hwy                     # (Cin, 1)
    v = jnp.sum(wt_ref[...].astype(jnp.float32) * ypool, axis=0,
                keepdims=True)                                   # (1, 2C)
    v = v * scale + b_ref[...]
    out_ref[...] = jnp.where(v >= 0, v, NEG_SLOPE * v)


# ---------------------------------------------------------------------------
# Stage 2a (default path): whole row (padded HW) per block.
# Two-pass mean/var with masked pad columns; the output is emitted as
# x*gain + bias so no full-tile centered temporary is materialized.
# ---------------------------------------------------------------------------
def normalize_row_kernel(x_ref, mv_ref, sv_ref, o_ref, *,
                         hw, padded, inv_hw, inv_hwm1):
    xb = x_ref[...].astype(jnp.float32)                          # (tR, HWp)
    mean = jnp.sum(xb, axis=1, keepdims=True) * inv_hw           # pads are 0 -> exact
    d = xb - mean
    sq = d * d
    if padded:
        col = jax.lax.broadcasted_iota(jnp.int32, sq.shape, 1)
        sq = jnp.where(col < hw, sq, 0.0)
    var = jnp.sum(sq, axis=1, keepdims=True) * inv_hwm1
    g = sv_ref[...] / (jnp.sqrt(var) + EPS)                      # per-row divide only
    bias = mv_ref[...] - mean * g                                # fold mean into bias
    # Re-read x for the output pass instead of keeping a full-tile temp live
    # across the variance reduction.
    o_ref[...] = (x_ref[...].astype(jnp.float32) * g + bias).astype(o_ref.dtype)


# ---------------------------------------------------------------------------
# Stage 2b (large-HW path): HW tiled as a second grid axis.
# Pass 1 accumulates per-row sum / sum-of-squares; pass 2 applies gain/bias.
# ---------------------------------------------------------------------------
def stats_kernel(x_ref, mv_ref, sv_ref, gain_ref, bias_ref, sum_acc, sq_acc, *,
                 inv_hw, inv_hwm1):
    c = pl.program_id(1)

    @pl.when(c == 0)
    def _():
        sum_acc[...] = jnp.zeros_like(sum_acc)
        sq_acc[...] = jnp.zeros_like(sq_acc)

    xb = x_ref[...].astype(jnp.float32)                          # (tR, tC)
    sum_acc[...] += jnp.sum(xb, axis=1, keepdims=True)
    sq_acc[...] += jnp.sum(xb * xb, axis=1, keepdims=True)

    @pl.when(c == pl.num_programs(1) - 1)
    def _():
        mean = sum_acc[...] * inv_hw
        var = jnp.maximum((sq_acc[...] - sum_acc[...] * mean) * inv_hwm1, 0.0)
        g = sv_ref[...] / (jnp.sqrt(var) + EPS)
        gain_ref[...] = g
        bias_ref[...] = mv_ref[...] - mean * g


def apply_kernel(x_ref, gain_ref, bias_ref, o_ref):
    o_ref[...] = (x_ref[...].astype(jnp.float32) * gain_ref[...]
                  + bias_ref[...]).astype(o_ref.dtype)


# ---------------------------------------------------------------------------
# Tile sizing
# ---------------------------------------------------------------------------
def _row_tile(n_rows, hwp, itemsize, row_align, budget):
    """Row tile for the whole-row path, or None if a minimal block won't fit."""
    # Per row: double-buffered x + out blocks plus ~2 f32 tiles of temporaries
    # (bf16 upcast / centered operand) that the compiler materializes.
    per_row = hwp * (4 * itemsize + 8)
    if per_row * min(n_rows, row_align) > budget:
        return None
    t = min(n_rows, budget // per_row)
    if t < n_rows:
        t = max(row_align, (t // row_align) * row_align)
    # Guarantee >= 2 grid steps when possible so v7x's second TensorCore gets
    # a share of the ("parallel",) row axis.
    if n_rows > row_align:
        t = min(t, _round_up(pl.cdiv(n_rows, 2), row_align))
    return t


def _col_tiles(n_rows, hwp, itemsize, row_align, budget, col_tile):
    tR = min(n_rows, row_align)
    if col_tile is not None:
        return tR, col_tile
    per_elem = 4 * itemsize + 8
    tC = (budget // (tR * per_elem)) // 128 * 128
    tC = max(128, min(tC, hwp))
    return tR, tC


# ---------------------------------------------------------------------------
# Forward
# ---------------------------------------------------------------------------
def feature_forward(x, y, w1, b1, w2, b2, *,
                    budget_bytes=VMEM_DATA_BUDGET,
                    _force_col_path=False, _col_tile=None):
    """x: (B, C, H, W), y: (B, Cin, Hy, Wy). Returns (B, C, H, W)."""
    B, C, H, W = x.shape
    By, Cin, Hy, Wy = y.shape
    Cout = w1.shape[0]
    assert By == B and Cout == C and w1.shape[1] == Cin
    HW = H * W
    HWy = Hy * Wy
    scale = 1.0 / math.sqrt(Cin)

    # ---- Stage 1: pooled-y affine (tiny; one grid step per batch) ----
    y3 = y.reshape(B, Cin, HWy)                                   # natural layout
    wt = jnp.concatenate([w1, w2], axis=0).astype(jnp.float32).T  # (Cin, 2C)
    bc = jnp.concatenate([b1, b2]).astype(jnp.float32).reshape(1, 2 * C)

    aff = functools.partial(affine_kernel, scale=scale, inv_hwy=1.0 / HWy)
    msv = pl.pallas_call(
        aff,
        out_shape=jax.ShapeDtypeStruct((B, 1, 2 * C), jnp.float32),
        grid_spec=pltpu.PrefetchScalarGridSpec(
            num_scalar_prefetch=0,
            grid=(B,),
            in_specs=[
                pl.BlockSpec((None, Cin, HWy), lambda b: (b, 0, 0)),
                pl.BlockSpec((Cin, 2 * C), lambda b: (0, 0)),
                pl.BlockSpec((1, 2 * C), lambda b: (0, 0)),
            ],
            out_specs=pl.BlockSpec((None, 1, 2 * C), lambda b: (b, 0, 0)),
        ),
        compiler_params=pltpu.CompilerParams(
            dimension_semantics=("parallel",)),
    )(y3, wt, bc)

    R = B * C
    mv2 = msv[:, 0, :C].reshape(R, 1)
    sv2 = msv[:, 0, C:].reshape(R, 1)

    # ---- Stage 2: per-(batch, channel) row normalization ----
    HWp = _round_up(HW, 128)            # lane-dense (unmasked) output stores
    x2 = x.reshape(R, HW)
    if HWp != HW:
        x2 = jnp.pad(x2, ((0, 0), (0, HWp - HW)))

    itemsize = x.dtype.itemsize
    row_align = _sublane_align(itemsize)
    inv_hw = 1.0 / HW
    # TODO(synk): HW == 1 yields variance 0 here; torch's unbiased std gives NaN.
    inv_hwm1 = 1.0 / max(HW - 1, 1)

    tR = None if _force_col_path else _row_tile(R, HWp, itemsize, row_align,
                                                budget_bytes)

    if tR is not None:
        grid_r = pl.cdiv(R, tR)
        kern = functools.partial(normalize_row_kernel, hw=HW,
                                 padded=(HWp != HW),
                                 inv_hw=inv_hw, inv_hwm1=inv_hwm1)
        out2 = pl.pallas_call(
            kern,
            out_shape=jax.ShapeDtypeStruct((R, HWp), x.dtype),
            grid_spec=pltpu.PrefetchScalarGridSpec(
                num_scalar_prefetch=0,
                grid=(grid_r,),
                in_specs=[
                    pl.BlockSpec((tR, HWp), lambda i: (i, 0)),
                    pl.BlockSpec((tR, 1), lambda i: (i, 0)),
                    pl.BlockSpec((tR, 1), lambda i: (i, 0)),
                ],
                out_specs=pl.BlockSpec((tR, HWp), lambda i: (i, 0)),
            ),
            compiler_params=pltpu.CompilerParams(
                dimension_semantics=("parallel",),
                vmem_limit_bytes=VMEM_LIMIT_BYTES),
        )(x2, mv2, sv2)
    else:
        # Large-HW path: a whole row does not fit the VMEM budget, so HW is
        # tiled as an "arbitrary" grid axis: stats pass + normalize pass.
        tRc, tC = _col_tiles(R, HWp, itemsize, row_align, budget_bytes, _col_tile)
        grid_r = pl.cdiv(R, tRc)
        grid_c = pl.cdiv(HWp, tC)

        stats = functools.partial(stats_kernel, inv_hw=inv_hw, inv_hwm1=inv_hwm1)
        gain, bias = pl.pallas_call(
            stats,
            out_shape=(jax.ShapeDtypeStruct((R, 1), jnp.float32),
                       jax.ShapeDtypeStruct((R, 1), jnp.float32)),
            grid_spec=pltpu.PrefetchScalarGridSpec(
                num_scalar_prefetch=0,
                grid=(grid_r, grid_c),
                in_specs=[
                    pl.BlockSpec((tRc, tC), lambda i, c: (i, c)),
                    pl.BlockSpec((tRc, 1), lambda i, c: (i, 0)),
                    pl.BlockSpec((tRc, 1), lambda i, c: (i, 0)),
                ],
                out_specs=[
                    pl.BlockSpec((tRc, 1), lambda i, c: (i, 0)),
                    pl.BlockSpec((tRc, 1), lambda i, c: (i, 0)),
                ],
                scratch_shapes=[pltpu.VMEM((tRc, 1), jnp.float32),
                                pltpu.VMEM((tRc, 1), jnp.float32)]),
            compiler_params=pltpu.CompilerParams(
                dimension_semantics=("parallel", "arbitrary"),
                vmem_limit_bytes=VMEM_LIMIT_BYTES),
        )(x2, mv2, sv2)

        out2 = pl.pallas_call(
            apply_kernel,
            out_shape=jax.ShapeDtypeStruct((R, HWp), x.dtype),
            grid_spec=pltpu.PrefetchScalarGridSpec(
                num_scalar_prefetch=0,
                grid=(grid_r, grid_c),
                in_specs=[
                    pl.BlockSpec((tRc, tC), lambda i, c: (i, c)),
                    pl.BlockSpec((tRc, 1), lambda i, c: (i, 0)),
                    pl.BlockSpec((tRc, 1), lambda i, c: (i, 0)),
                ],
                out_specs=pl.BlockSpec((tRc, tC), lambda i, c: (i, c)),
            ),
            compiler_params=pltpu.CompilerParams(
                dimension_semantics=("parallel", "parallel"),
                vmem_limit_bytes=VMEM_LIMIT_BYTES),
        )(x2, gain, bias)

    if HWp != HW:
        out2 = out2[:, :HW]
    return out2.reshape(B, C, H, W)


def feature_reference(x, y, w1, b1, w2, b2):
    """Pure-JAX mirror of the PyTorch forward, for validation."""
    B, C, H, W = x.shape
    Cin = y.shape[1]
    scale = 1.0 / math.sqrt(Cin)
    xf = x.reshape(B, C, -1)
    ypool = jnp.mean(y, axis=(2, 3))                      # (B, Cin)
    std_feat = (jnp.std(xf, axis=2, ddof=1) + EPS)[..., None]
    mean_feat = jnp.mean(xf, axis=2)[..., None]
    mean = _leaky_relu(ypool @ (w1 * scale).T + b1)[..., None]
    std = _leaky_relu(ypool @ (w2 * scale).T + b2)[..., None]
    new_feature = std * (xf - mean_feat) / std_feat + mean
    return new_feature.reshape(B, C, H, W)


if __name__ == "__main__":
    B, C, H, W = 2, 4, 16, 16          # x: features to be re-normalized
    Cin, Hy, Wy = 4, 8, 8              # y: style/conditioning features
    Cout = C                           # torch broadcasting requires out_channel == C

    key = jax.random.PRNGKey(0)
    kx, ky, kw1, kb1, kw2, kb2 = jax.random.split(key, 6)
    x = jax.random.normal(kx, (B, C, H, W), dtype=jnp.float32)
    y = jax.random.normal(ky, (B, Cin, Hy, Wy), dtype=jnp.float32)
    w1 = jax.random.normal(kw1, (Cout, Cin), dtype=jnp.float32)
    b1 = 0.1 * jax.random.normal(kb1, (Cout,), dtype=jnp.float32)
    w2 = jax.random.normal(kw2, (Cout, Cin), dtype=jnp.float32)
    b2 = 0.1 * jax.random.normal(kb2, (Cout,), dtype=jnp.float32)

    ref = feature_reference(x, y, w1, b1, w2, b2)

    # Default (whole-row, lane-dense) path.
    out = jax.block_until_ready(feature_forward(x, y, w1, b1, w2, b2))
    assert out.shape == (B, C, H, W)
    assert jnp.allclose(out, ref, atol=1e-4, rtol=1e-4), "mismatch (row path)"

    # Padded / masked-reduction path (H*W not a multiple of 128).
    Hs, Ws = 10, 10
    xs = jax.random.normal(kx, (B, C, Hs, Ws), dtype=jnp.float32)
    ref_s = feature_reference(xs, y, w1, b1, w2, b2)
    out_s = jax.block_until_ready(feature_forward(xs, y, w1, b1, w2, b2))
    assert jnp.allclose(out_s, ref_s, atol=1e-4, rtol=1e-4), "mismatch (padded path)"

    # Large-HW column-tiled path, forced at small size to exercise it.
    out_c = jax.block_until_ready(
        feature_forward(x, y, w1, b1, w2, b2, _force_col_path=True, _col_tile=128))
    assert jnp.allclose(out_c, ref, atol=1e-4, rtol=1e-4), "mismatch (column path)"

    print("KERNEL_OK")
</pallas_src>

<mosaic_0001>
module attributes {stable_mosaic.version = 11 : i64} {
  func.func @affine_kernel(%arg0: i32, %arg1: memref<1x4x64xf32, #tpu.memory_space<vmem>>, %arg2: memref<4x8xf32, #tpu.memory_space<vmem>>, %arg3: memref<1x8xf32, #tpu.memory_space<vmem>>, %arg4: memref<1x1x8xf32, #tpu.memory_space<vmem>>) attributes {dimension_semantics = [#tpu.dimension_semantics<parallel>], iteration_bounds = array<i64: 2>, scalar_prefetch = 0 : i64, scratch_operands = 0 : i64, tpu.core_type = #tpu.core_type<tc>, window_params = [{transform_indices = @transform_0, window_bounds = array<i64: 1, 4, 64>}, {pipeline_mode = #tpu.pipeline_mode<synchronous>, transform_indices = @transform_1, window_bounds = array<i64: 4, 8>}, {pipeline_mode = #tpu.pipeline_mode<synchronous>, transform_indices = @transform_2, window_bounds = array<i64: 1, 8>}, {transform_indices = @transform_3, window_bounds = array<i64: 1, 1, 8>}]} {
    %c0 = arith.constant 0 : index
    %c0_0 = arith.constant 0 : index
    %c0_1 = arith.constant 0 : index
    %0 = vector.load %arg1[%c0, %c0_0, %c0_1] : memref<1x4x64xf32, #tpu.memory_space<vmem>>, vector<1x4x64xf32>
    %1 = vector.shape_cast %0 : vector<1x4x64xf32> to vector<4x64xf32>
    %cst = arith.constant dense<0.000000e+00> : vector<4xf32>
    %2 = vector.multi_reduction <add>, %1, %cst [1] : vector<4x64xf32> to vector<4xf32>
    %3 = vector.shape_cast %2 : vector<4xf32> to vector<4x1xf32>
    %cst_2 = arith.constant 1.562500e-02 : f32
    %4 = vector.broadcast %cst_2 : f32 to vector<4x1xf32>
    %5 = arith.mulf %3, %4 : vector<4x1xf32>
    %c0_3 = arith.constant 0 : index
    %c0_4 = arith.constant 0 : index
    %6 = vector.load %arg2[%c0_3, %c0_4] : memref<4x8xf32, #tpu.memory_space<vmem>>, vector<4x8xf32>
    %7 = vector.broadcast %5 : vector<4x1xf32> to vector<4x8xf32>
    %8 = arith.mulf %6, %7 : vector<4x8xf32>
    %cst_5 = arith.constant dense<0.000000e+00> : vector<8xf32>
    %9 = vector.multi_reduction <add>, %8, %cst_5 [0] : vector<4x8xf32> to vector<8xf32>
    %10 = vector.shape_cast %9 : vector<8xf32> to vector<1x8xf32>
    %cst_6 = arith.constant 5.000000e-01 : f32
    %11 = vector.broadcast %cst_6 : f32 to vector<1x8xf32>
    %12 = arith.mulf %10, %11 : vector<1x8xf32>
    %c0_7 = arith.constant 0 : index
    %c0_8 = arith.constant 0 : index
    %13 = vector.load %arg3[%c0_7, %c0_8] : memref<1x8xf32, #tpu.memory_space<vmem>>, vector<1x8xf32>
    %14 = arith.addf %12, %13 : vector<1x8xf32>
    %cst_9 = arith.constant 0.000000e+00 : f32
    %15 = vector.broadcast %cst_9 : f32 to vector<1x8xf32>
    %16 = arith.cmpf oge, %14, %15 : vector<1x8xf32>
    %cst_10 = arith.constant 0.00999999977 : f32
    %17 = vector.broadcast %cst_10 : f32 to vector<1x8xf32>
    %18 = arith.mulf %17, %14 : vector<1x8xf32>
    %19 = arith.select %16, %14, %18 : vector<1x8xi1>, vector<1x8xf32>
    %c0_11 = arith.constant 0 : index
    %c0_12 = arith.constant 0 : index
    %c0_13 = arith.constant 0 : index
    %20 = vector.load %arg4[%c0_11, %c0_12, %c0_13] : memref<1x1x8xf32, #tpu.memory_space<vmem>>, vector<1x1x8xf32>
    %21 = vector.shape_cast %20 : vector<1x1x8xf32> to vector<1x8xf32>
    %22 = vector.shape_cast %19 : vector<1x8xf32> to vector<1x1x8xf32>
    tpu.vector_store %arg4[%c0_11, %c0_12, %c0_13], %22 {strides = array<i32>} : memref<1x1x8xf32, #tpu.memory_space<vmem>>, vector<1x1x8xf32>,
    return
  }
  func.func @transform_0(%arg0: i32) -> (i32, i32, i32) {
    %c0_i32 = arith.constant 0 : i32
    %c0_i32_0 = arith.constant 0 : i32
    %c0_i32_1 = arith.constant 0 : i32
    return %arg0, %c0_i32, %c0_i32_0 : i32, i32, i32
  }
  func.func @transform_1(%arg0: i32) -> (i32, i32) {
    %c0_i32 = arith.constant 0 : i32
    %c0_i32_0 = arith.constant 0 : i32
    %c0_i32_1 = arith.constant 0 : i32
    return %c0_i32, %c0_i32_0 : i32, i32
  }
  func.func @transform_2(%arg0: i32) -> (i32, i32) {
    %c0_i32 = arith.constant 0 : i32
    %c0_i32_0 = arith.constant 0 : i32
    %c0_i32_1 = arith.constant 0 : i32
    return %c0_i32, %c0_i32_0 : i32, i32
  }
  func.func @transform_3(%arg0: i32) -> (i32, i32, i32) {
    %c0_i32 = arith.constant 0 : i32
    %c0_i32_0 = arith.constant 0 : i32
    %c0_i32_1 = arith.constant 0 : i32
    return %arg0, %c0_i32, %c0_i32_0 : i32, i32, i32
  }
}

</mosaic_0001>

<llo_original>
// kernel: tpu_custom_call.1
$region0: #{tpu_custom_call.1}
  #allocation0 [shape = 'u32[]', space=smem, size = 0x4, offset = 0x4, fixed_abs, tag = 'smem constant byte address 0x4 - core index']
  #allocation1 [shape = 'u32[72,128]{1,0:T(1,128)}', space=vmem, size = 0x9000, scoped, tag = 'internal scratch']
  %s0 = inlined_call_operand.hbm [shape: f32[2,4,64], index: 0, kind: input, shape index: {}]
  %s1 = inlined_call_operand.hbm [shape: f32[4,8], index: 1, kind: input, shape index: {}]
  %s2 = inlined_call_operand.vmem [shape: f32[1,8], index: 2, kind: input, shape index: {}]
  %s3 = inlined_call_operand.hbm [shape: f32[2,1,8], index: 3, kind: output, shape index: {}]
  %s4 = sld [smem:[#allocation0]]
  $region53: #{tpu_custom_call.1} parent=0
    _
  %s6 = ssub.s32 1, %s4
  %s7 = scalar_select 0, %s6, %s4
  $region1: #{tpu_custom_call.1} parent=0
    #allocation2 [shape = 'u8[4096]{0}', space=vmem, size = 0x1000, scoped, tag = 'input window, operand 0']
    #allocation3 [shape = 's32[2]{0}', space=sflag, size = 0x8, scoped, tag = 'scoped memory for tpu_custom_call.1']
    #allocation4 [shape = 's32[2]{0}', space=sflag, size = 0x8, scoped, tag = 'scoped memory for tpu_custom_call.1']
    #allocation5 [shape = 'u8[2048]{0}', space=vmem, size = 0x800, scoped, tag = 'input window, operand 1, single buffered']
    #allocation6 [shape = 's32[1]{0}', space=sflag, size = 0x4, scoped, tag = 'scoped memory for tpu_custom_call.1']
    #allocation7 [shape = 'u8[1024]{0}', space=vmem, size = 0x400, scoped, tag = 'output window, operand 0']
    %8 = vsyncpa [#allocation3], 0
    %s9 = scalar_lea.sflag [#allocation3], 1
    %10 = vsyncpa %s9, 0
    %11 = vsyncpa [#allocation6], 0
    %12 = vsyncpa [#allocation4], 0
    %s13 = scalar_lea.sflag [#allocation4], 1
    %14 = vsyncpa %s13, 0
    loop: start=0, step=1, limit=4
    $region2: #{tpu_custom_call.1} parent=1 // loop_pre_header
      _
    $region3: #{tpu_custom_call.1} parent=1 // loop_header
      %s16 = sphi 0, %s20
      %p17 = scmp.ge.s32.totalorder %s16, 4
      %s26 = sphi 0, %s28
      %s29 = sphi 0, %s26
      %s30 = sphi 0, %s29
      %s46 = sphi 0, %s30
      %s50 = sphi 0, %s50
      %s52 = sphi 0, %s50
      %s53 = sphi 0, %s52
      %s67 = sphi 0, %s53
      %s71 = sphi 0, %s71
      %s73 = sphi 0, %s71
      %s74 = sphi 0, %s73
      %s88 = sphi 0, %s74
      %s94 = sphi 0, %s96
      %s97 = sphi 0, %s94
      %s98 = sphi 0, %s97
      %s114 = sphi 0, %s98
    $region4: #{tpu_custom_call.1} parent=1 // loop_header_branch
      %19 = sbr.rel (%p17) target = $region8
    $region5: #{tpu_custom_call.1} parent=1 // loop_body
      %s21 = ssub.s32 %s16, 1
      %s22 = ssub.s32 %s16, 2
      %s23 = sadd.s32 %s16, 1
      %s24 = ssub.s32 %s16, %s23
      %p25 = scmp.eq.s32.totalorder %s24, 0
      %s27 = sadd.s32 %s26, 1
      %s28 = scalar_select %p25, %s26, %s27
      %p31 = pneg %p25
      %p32 = scmp.eq.s32.totalorder %s16, 1
      %p33 = por %p31, %p32
      %p34 = scmp.ne.s32.totalorder %s26, %s29
      %p35 = scmp.eq.s32.totalorder %s16, 0
      %p36 = por %p34, %p35
      %p37 = scmp.ne.s32.totalorder %s26, %s29
      %p38 = scmp.eq.s32.totalorder %s21, 1
      %p39 = por %p37, %p38
      %p40 = scmp.ne.s32.totalorder %s29, %s30
      %p41 = scmp.eq.s32.totalorder %s21, 0
      %p42 = por %p40, %p41
      %p43 = scmp.ne.s32.totalorder %s29, %s30
      %p44 = scmp.eq.s32.totalorder %s22, 1
      %p45 = por %p43, %p44
      %p47 = scmp.ne.s32.totalorder %s30, %s46
      %p48 = scmp.eq.s32.totalorder %s22, 0
      %p49 = por %p47, %p48
      %s51 = sadd.s32 %s50, 1
      %p54 = scmp.eq.s32.totalorder %s16, 1
      %p55 = scmp.ne.s32.totalorder %s50, %s52
      %p56 = scmp.eq.s32.totalorder %s16, 0
      %p57 = por %p55, %p56
      %p58 = scmp.ne.s32.totalorder %s50, %s52
      %p59 = scmp.eq.s32.totalorder %s21, 1
      %p60 = por %p58, %p59
      %p61 = scmp.ne.s32.totalorder %s52, %s53
      %p62 = scmp.eq.s32.totalorder %s21, 0
      %p63 = por %p61, %p62
      %p64 = scmp.ne.s32.totalorder %s52, %s53
      %p65 = scmp.eq.s32.totalorder %s22, 1
      %p66 = por %p64, %p65
      %p68 = scmp.ne.s32.totalorder %s53, %s67
      %p69 = scmp.eq.s32.totalorder %s22, 0
      %p70 = por %p68, %p69
      %s72 = sadd.s32 %s71, 1
      %p75 = scmp.eq.s32.totalorder %s16, 1
      %p76 = scmp.ne.s32.totalorder %s71, %s73
      %p77 = scmp.eq.s32.totalorder %s16, 0
      %p78 = por %p76, %p77
      %p79 = scmp.ne.s32.totalorder %s71, %s73
      %p80 = scmp.eq.s32.totalorder %s21, 1
      %p81 = por %p79, %p80
      %p82 = scmp.ne.s32.totalorder %s73, %s74
      %p83 = scmp.eq.s32.totalorder %s21, 0
      %p84 = por %p82, %p83
      %p85 = scmp.ne.s32.totalorder %s73, %s74
      %p86 = scmp.eq.s32.totalorder %s22, 1
      %p87 = por %p85, %p86
      %p89 = scmp.ne.s32.totalorder %s74, %s88
      %p90 = scmp.eq.s32.totalorder %s22, 0
      %p91 = por %p89, %p90
      %s92 = ssub.s32 %s16, %s23
      %p93 = scmp.eq.s32.totalorder %s92, 0
      %s95 = sadd.s32 %s94, 1
      %s96 = scalar_select %p93, %s94, %s95
      %p99 = pneg %p93
      %p100 = scmp.eq.s32.totalorder %s16, 1
      %p101 = por %p99, %p100
      %p102 = scmp.ne.s32.totalorder %s94, %s97
      %p103 = scmp.eq.s32.totalorder %s16, 0
      %p104 = por %p102, %p103
      %p105 = scmp.ne.s32.totalorder %s94, %s97
      %p106 = scmp.eq.s32.totalorder %s21, 1
      %p107 = por %p105, %p106
      %p108 = scmp.ne.s32.totalorder %s97, %s98
      %p109 = scmp.eq.s32.totalorder %s21, 0
      %p110 = por %p108, %p109
      %p111 = scmp.ne.s32.totalorder %s97, %s98
      %p112 = scmp.eq.s32.totalorder %s22, 1
      %p113 = por %p111, %p112
      %p115 = scmp.ne.s32.totalorder %s98, %s114
      %p116 = scmp.eq.s32.totalorder %s22, 0
      %p117 = por %p115, %p116
      %p118 = scmp.le.s32.totalorder 1, %s16
      %p119 = scmp.lt.s32.totalorder %s16, 3
      %p120 = pnand %p118, %p119
      %p121 = pneg %p120
      // Predicated region
      $region9: #{tpu_custom_call.1} parent=5 // pred_check
        _
      $region10: #{tpu_custom_call.1} parent=5 // pred_check_branch
        %123 = sbr.rel (%p120) target = $region12
      $region11: #{tpu_custom_call.1} parent=5 // pred_region
        %s124 = ssub.s32 %s16, 1
        // Predicated region
        $region13: #{tpu_custom_call.1} parent=11 // pred_check
          %p125 = pneg %p63
        $region14: #{tpu_custom_call.1} parent=11 // pred_check_branch
          %127 = sbr.rel (%p125) target = $region16
        $region15: #{tpu_custom_call.1} parent=11 // pred_region
          %129 = vsyncadd [#allocation6], 0
          %s131 = sshll.u32 %s1, 4
          %s132 = int_to_ptr.hbm [resolvable:$true] %s131
          %s133 = sshll.u32 [#allocation5], 4
          %s134 = int_to_ptr.vmem [resolvable:$true] %s133
          %136 = dma.hbm_to_vmem [thread:$0]  %s132, 64, %s134, [#allocation6]
        $region16: #{tpu_custom_call.1} parent=11 // pred_fallthru
          _
        // Predicated region
        $region17: #{tpu_custom_call.1} parent=11 // pred_check
          %p137 = pneg %p84
        $region18: #{tpu_custom_call.1} parent=11 // pred_check_branch
          %139 = sbr.rel (%p137) target = $region20
        $region19: #{tpu_custom_call.1} parent=11 // pred_region
          _
        $region20: #{tpu_custom_call.1} parent=11 // pred_fallthru
          _
      $region12: #{tpu_custom_call.1} parent=5 // pred_fallthru
        _
      %p140 = scmp.lt.s32.totalorder %s16, 2
      // Predicated region
      $region21: #{tpu_custom_call.1} parent=5 // pred_check
        %p141 = pneg %p140
      $region22: #{tpu_custom_call.1} parent=5 // pred_check_branch
        %143 = sbr.rel (%p141) target = $region24
      $region23: #{tpu_custom_call.1} parent=5 // pred_region
        // Predicated region
        $region25: #{tpu_custom_call.1} parent=23 // pred_check
          %p144 = pneg %p36
        $region26: #{tpu_custom_call.1} parent=23 // pred_check_branch
          %146 = sbr.rel (%p144) target = $region28
        $region27: #{tpu_custom_call.1} parent=23 // pred_region
          %s147 = sand.u32 %s26, 1
          %s148 = scalar_lea.sflag [#allocation3], %s147
          %s149 = sand.u32 %s26, 1
          %s150 = smul.addr %s149, 4
          %s151 = scalar_lea.vmem [#allocation2], %s150
          %153 = vsyncadd %s148, 0
          %s154 = smul.addr %s16, 4
          %s155 = scalar_lea.hbm %s0, %s154
          %s157 = sshll.u32 %s155, 4
          %s158 = int_to_ptr.hbm [resolvable:$true] %s157
          %s159 = sshll.u32 %s151, 4
          %s160 = int_to_ptr.vmem [resolvable:$true] %s159
          %162 = dma.hbm_to_vmem [thread:$0]  %s158, 64, %s160, %s148
        $region28: #{tpu_custom_call.1} parent=23 // pred_fallthru
          _
      $region24: #{tpu_custom_call.1} parent=5 // pred_fallthru
        _
      %p163 = scmp.le.s32.totalorder 1, %s16
      %p164 = scmp.lt.s32.totalorder %s16, 3
      %p165 = pnand %p163, %p164
      %p166 = pneg %p165
      // Predicated region
      $region29: #{tpu_custom_call.1} parent=5 // pred_check
        _
      $region30: #{tpu_custom_call.1} parent=5 // pred_check_branch
        %168 = sbr.rel (%p165) target = $region32
      $region31: #{tpu_custom_call.1} parent=5 // pred_region
        %s169 = ssub.s32 %s16, 1
        %s170 = sand.u32 %s29, 1
        %s171 = scalar_lea.sflag [#allocation3], %s170
        %s172 = sand.u32 %s29, 1
        %s173 = smul.addr %s172, 4
        %s174 = scalar_lea.vmem [#allocation2], %s173
        // Predicated region
        $region33: #{tpu_custom_call.1} parent=31 // pred_check
          %p175 = pneg %p42
        $region34: #{tpu_custom_call.1} parent=31 // pred_check_branch
          %177 = sbr.rel (%p175) target = $region36
        $region35: #{tpu_custom_call.1} parent=31 // pred_region
          %179 = dma.done %s171, 64
        $region36: #{tpu_custom_call.1} parent=31 // pred_fallthru
          _
        // Predicated region
        $region37: #{tpu_custom_call.1} parent=31 // pred_check
          %p180 = pneg %p63
        $region38: #{tpu_custom_call.1} parent=31 // pred_check_branch
          %182 = sbr.rel (%p180) target = $region40
        $region39: #{tpu_custom_call.1} parent=31 // pred_region
          %184 = dma.done [#allocation6], 64
        $region40: #{tpu_custom_call.1} parent=31 // pred_fallthru
          _
        %s185 = sand.u32 %s29, 1
        %s186 = scalar_lea.sflag [#allocation3], %s185
        %s187 = sand.u32 %s29, 1
        %s188 = smul.addr %s187, 4
        %s189 = scalar_lea.vmem [#allocation2], %s188
        %p190 = pneg %p42
        %p191 = pneg %p39
        %p192 = pneg %p63
        %p193 = pneg %p60
        %p194 = pneg %p84
        %p195 = pneg %p81
        %p196 = pneg %p110
        %p197 = pneg %p107
        %s198 = sand.u32 %s97, 1
        %s199 = scalar_lea.sflag [#allocation4], %s198
        %s200 = sand.u32 %s97, 1
        %s201 = scalar_lea.vmem [#allocation7], %s200
        %v202 = vld [vmem:[%s174] sm:$0xf]
        %vm203 = vcmask 519168
        %v204 = vsel %vm203, %v202, 0.0
        %205 = vadd.xlane.f32.xlu0 %v204
        %v206 = vpop.xlane.xlu0 %205
        %v207 = vmul.f32 %v206, 0.015625
        %v208 = vld [vmem:[#allocation5] sm:$0xf]
        %v209 = vmul.f32 %v208, %v207
        %vm210 = vcmask 60416
        %v211 = vsel %vm210, %v209, 0.0
        %v212 = vrot.slane %v211, 4
        %v213 = vadd.f32 %v211, %v212
        %v214 = vrot.slane %v213, 2
        %v215 = vadd.f32 %v213, %v214
        %v216 = vrot.slane %v215, 1
        %v217 = vadd.f32 %v215, %v216
        %v218 = vmul.f32 %v217, 0.5
        %v219 = vld [vmem:[%s2] sm:$0x1]
        %v220 = vadd.f32 %v218, %v219
        %vm221 = vcmp.ge.f32.partialorder %v220, 0.0
        %v222 = vmul.f32 %v220, 0.01
        %v223 = vsel %vm221, %v220, %v222
        %vm224 = vcmask 57344
        %225 = vst.msk [vmem:[%s201] sm:$0x1] %vm224, %v223
        %s226 = sand.u32 %s97, 1
        %s227 = scalar_lea.sflag [#allocation4], %s226
        %s228 = sand.u32 %s97, 1
        %s229 = scalar_lea.vmem [#allocation7], %s228
        // Predicated region
        $region41: #{tpu_custom_call.1} parent=31 // pred_check
          %p230 = pneg %p107
        $region42: #{tpu_custom_call.1} parent=31 // pred_check_branch
          %232 = sbr.rel (%p230) target = $region44
        $region43: #{tpu_custom_call.1} parent=31 // pred_region
          %234 = vsyncadd %s227, 0
          %s235 = scalar_lea.hbm %s3, %s21
          %s237 = sshll.u32 %s229, 4
          %s238 = int_to_ptr.vmem [resolvable:$true] %s237
          %s239 = sshll.u32 %s235, 4
          %s240 = int_to_ptr.hbm [resolvable:$true] %s239
          %242 = dma.vmem_to_hbm [thread:$0]  %s238, 16, %s240, %s227
        $region44: #{tpu_custom_call.1} parent=31 // pred_fallthru
          _
      $region32: #{tpu_custom_call.1} parent=5 // pred_fallthru
        _
      %p243 = scmp.le.s32.totalorder 2, %s16
      // Predicated region
      $region45: #{tpu_custom_call.1} parent=5 // pred_check
        %p244 = pneg %p243
      $region46: #{tpu_custom_call.1} parent=5 // pred_check_branch
        %246 = sbr.rel (%p244) target = $region48
      $region47: #{tpu_custom_call.1} parent=5 // pred_region
        %s247 = ssub.s32 %s16, 2
        // Predicated region
        $region49: #{tpu_custom_call.1} parent=47 // pred_check
          %p248 = pneg %p113
        $region50: #{tpu_custom_call.1} parent=47 // pred_check_branch
          %250 = sbr.rel (%p248) target = $region52
        $region51: #{tpu_custom_call.1} parent=47 // pred_region
          %s251 = sand.u32 %s98, 1
          %s252 = scalar_lea.sflag [#allocation4], %s251
          %s253 = sand.u32 %s98, 1
          %s254 = scalar_lea.vmem [#allocation7], %s253
          %256 = dma.done %s252, 16
        $region52: #{tpu_custom_call.1} parent=47 // pred_fallthru
          _
      $region48: #{tpu_custom_call.1} parent=5 // pred_fallthru
        _
    $region6: #{tpu_custom_call.1} parent=1 // loop_footer
      %s20 = sadd.s32 1, %s16
    $region7: #{tpu_custom_call.1} parent=1 // loop_footer_branch
      %15 = sbr.rel target = $region3
    $region8: #{tpu_custom_call.1} parent=1 // loop_exit
      _
    %257 = vsyncpa [#allocation3], 1
    %s258 = scalar_lea.sflag [#allocation3], 1
    %259 = vsyncpa %s258, 1
    %260 = vsyncpa [#allocation6], 1
    %261 = vsyncpa [#allocation4], 1
    %s262 = scalar_lea.sflag [#allocation4], 1
    %263 = vsyncpa %s262, 1

</llo_original>
